<compile_context>
chip_gen: v6e
topology: v6e:2x2x1
jax: 0.10.0
libtpu: 0.0.40
codegen_flags: <defaults>
</compile_context>

<pallas_src>
import math
import functools

import jax
import jax.numpy as jnp
from jax import lax
from jax.experimental import pallas as pl
from jax.experimental.pallas import tpu as pltpu


def _pe_dropout_kernel(seed_ref, x_ref, pe_ref, o_ref, *,
                       dropout_p, keep_scale, drop_thresh,
                       rows_total, cols, block_b, block_r, batch_major):
    # x_ref/o_ref: (TB, TR, C); pe_ref: (TR, C) — broadcasts over the batch-tile dim.
    y = x_ref[...] + pe_ref[...]

    if dropout_p > 0.0:
        if batch_major:
            b_blk, r_blk = pl.program_id(0), pl.program_id(1)
        else:
            r_blk, b_blk = pl.program_id(0), pl.program_id(1)
        shape = y.shape
        # Globally unique per-element counter (wraps mod 2^32; used only for hashing).
        b_idx = lax.broadcasted_iota(jnp.int32, shape, 0) + b_blk * block_b
        r_idx = lax.broadcasted_iota(jnp.int32, shape, 1) + r_blk * block_r
        c_idx = lax.broadcasted_iota(jnp.int32, shape, 2)
        flat = (b_idx * rows_total + r_idx) * cols + c_idx
        # Counter-based hash (murmur3 finalizer) mixed with the user seed.  Portable
        # (no pltpu.prng_*), and per-tile masks can't collide across different seeds
        # because the counter is global and the seed enters via a separate mix.
        h = flat.astype(jnp.uint32)
        h = h ^ (seed_ref[0].astype(jnp.uint32) * jnp.uint32(0x9E3779B9)
                 + jnp.uint32(0x7F4A7C15))
        h = h ^ (h >> 16)
        h = h * jnp.uint32(0x85EBCA6B)
        h = h ^ (h >> 13)
        h = h * jnp.uint32(0xC2B2AE35)
        h = h ^ (h >> 16)
        keep = h >= jnp.uint32(drop_thresh)       # P(drop) = drop_thresh / 2^32 ~= p
        # Stay in the input dtype: no f32 promotion on the streaming path.
        scale = jnp.asarray(keep_scale, dtype=y.dtype)
        y = jnp.where(keep, y * scale, jnp.zeros_like(y))

    o_ref[...] = y.astype(o_ref.dtype)


def make_positional_encoding(d_model: int, seq_len: int, dtype=jnp.float32):
    """Deterministic parameter setup (matches the torch __init__ buffer `pe`)."""
    position = jnp.arange(seq_len, dtype=jnp.float32)[:, None]                      # (S, 1)
    div_term = jnp.exp(
        jnp.arange(0, d_model, 2, dtype=jnp.float32) * (-math.log(10000.0) / d_model)
    )                                                                                # (D/2,)
    pe = jnp.zeros((seq_len, d_model), dtype=jnp.float32)
    pe = pe.at[:, 0::2].set(jnp.sin(position * div_term))
    pe = pe.at[:, 1::2].set(jnp.cos(position * div_term))
    return pe.astype(dtype)


def _vmem_budget():
    """Generation-aware block-size target and scoped-VMEM limit.

    Default (safe on v7x's 64 MiB VMEM): ~4 MiB x blocks, 48 MiB limit.
    On 128 MiB-VMEM chips (v5e/v6e) allow ~8 MiB blocks under a 96 MiB limit.
    """
    target_bytes = 4 * 1024 * 1024
    vmem_limit = 48 * 1024 * 1024
    try:
        if jax.devices()[0].platform == "tpu":
            info = pltpu.get_tpu_info()
            cap = int(getattr(info, "vmem_capacity_bytes", 0) or 0)
            if cap >= 100 * 1024 * 1024:
                target_bytes = 8 * 1024 * 1024
                vmem_limit = 96 * 1024 * 1024
    except Exception:
        pass
    return target_bytes, vmem_limit


def _choose_fold(flat_len: int, seq: int, d: int):
    """Fold (S, D) -> (R, C): largest lane-dense C (multiple of 128, <= 4096) keeping
    R >= 8 when possible.  If S*D has no multiple-of-128 divisor, keep the natural (S, D)
    blocking (sublane-dense, lane-masked) instead of a degenerate (1, S*D) row."""
    cands = [c for c in range(128, min(flat_len, 4096) + 1, 128) if flat_len % c == 0]
    if not cands:
        return seq, d
    good = [c for c in cands if flat_len // c >= 8]
    c = max(good) if good else min(cands)
    return flat_len // c, c


def _choose_tiles(batch: int, rows: int, cols: int, itemsize: int, target_bytes: int):
    """Pick (TB, TR) so one x block is ~target_bytes; TR is a multiple of the dtype-native
    sublane count (8 f32 / 16 bf16 / 32 int8) or equals the full row extent."""
    sub = max(8, 32 // itemsize)
    row_bytes = cols * itemsize
    rows_per_block = max(1, target_bytes // row_bytes)
    if rows_per_block >= rows:
        tr = rows
        tb = max(1, min(batch, target_bytes // max(rows * row_bytes, 1)))
    else:
        tb = 1
        tr = min(rows, max(sub, (rows_per_block // sub) * sub))
    return tb, tr, sub


def positional_encoding_forward(x, pe, *, dropout_p=0.0, seed=0):
    """x: (B, S, D); pe: (seq_len, D) with seq_len >= S. Returns (B, S, D)."""
    B, S, D = x.shape
    dropout_p = float(dropout_p)
    if dropout_p >= 1.0:
        # nn.Dropout(p=1) in training mode zeroes everything; avoids 1/(1-p) div-by-zero.
        return jnp.zeros_like(x)
    dropout_p = max(dropout_p, 0.0)

    itemsize = jnp.dtype(x.dtype).itemsize
    target_bytes, vmem_limit = _vmem_budget()

    # Glue (plain JAX layout plumbing): slice + pre-cast pe, fold (S, D) lane-dense.
    pe_sliced = pe[:S, :].astype(x.dtype)
    R, C = _choose_fold(S * D, S, D)
    x2 = x.reshape(B, R, C)
    pe2 = pe_sliced.reshape(R, C)

    TB, TR, sub = _choose_tiles(B, R, C, itemsize, target_bytes)
    num_r, num_b = pl.cdiv(R, TR), pl.cdiv(B, TB)

    # Megacore guard (v7x has 2 TCs): if everything collapsed into one block but there is
    # real work, split the seq axis 2-ways so both cores get a tile.
    if (num_r == 1 and num_b == 1 and R >= 2 * sub
            and B * R * C * itemsize >= (1 << 19)):
        half = (R + 1) // 2
        TR = min(R, ((half + sub - 1) // sub) * sub)
        num_r = pl.cdiv(R, TR)
    # If there is only one seq tile but several batch tiles, lead with the batch axis so
    # the sharded parallel axis has >= 2 steps.
    batch_major = (num_r == 1 and num_b >= 2)

    kernel = functools.partial(
        _pe_dropout_kernel,
        dropout_p=dropout_p,
        keep_scale=(1.0 / (1.0 - dropout_p)) if dropout_p > 0.0 else 1.0,
        drop_thresh=min(int(dropout_p * 4294967296.0), 4294967295),
        rows_total=R, cols=C, block_b=TB, block_r=TR, batch_major=batch_major,
    )
    seed_arr = jnp.array([seed], dtype=jnp.int32)

    if batch_major:
        grid = (num_b, num_r)
        x_map = lambda b, r, *_: (b, r, 0)
        pe_map = lambda b, r, *_: (r, 0)
    else:
        grid = (num_r, num_b)      # seq-tile outer: pe tile DMA'd once per seq-tile
        x_map = lambda r, b, *_: (b, r, 0)
        pe_map = lambda r, b, *_: (r, 0)

    out2 = pl.pallas_call(
        kernel,
        out_shape=jax.ShapeDtypeStruct((B, R, C), x.dtype),
        grid_spec=pltpu.PrefetchScalarGridSpec(
            num_scalar_prefetch=1,                      # seed scalar lives in SMEM
            grid=grid,
            in_specs=[
                pl.BlockSpec((TB, TR, C), x_map),
                pl.BlockSpec((TR, C), pe_map),
            ],
            out_specs=pl.BlockSpec((TB, TR, C), x_map),
        ),
        compiler_params=pltpu.CompilerParams(
            # Every grid step is independent (no accumulator): let megacore shard it.
            dimension_semantics=("parallel", "parallel"),
            vmem_limit_bytes=vmem_limit,
        ),
    )(seed_arr, x2, pe2)
    return out2.reshape(B, S, D)


if __name__ == "__main__":
    d_model = 32
    seq_len = 8
    batch = 2

    key = jax.random.PRNGKey(0)
    x = jax.random.normal(key, (batch, seq_len, d_model), dtype=jnp.float32)
    pe = make_positional_encoding(d_model, seq_len)

    # Eval-mode / p=0 dropout: pure positional-encoding add, exact reference check.
    out = positional_encoding_forward(x, pe, dropout_p=0.0, seed=0)
    out = jax.block_until_ready(out)
    ref = x + pe[None, :seq_len, :]
    assert out.shape == x.shape and out.dtype == x.dtype
    assert jnp.allclose(out, ref, atol=1e-6), "mismatch vs. reference"

    # Training-mode dropout path (in-kernel counter-hash PRNG; stream differs from torch).
    p = 0.25
    out_d = positional_encoding_forward(x, pe, dropout_p=p, seed=123)
    out_d = jax.block_until_ready(out_d)
    assert out_d.shape == x.shape and out_d.dtype == x.dtype
    scale = 1.0 / (1.0 - p)
    per_elem_ok = (jnp.abs(out_d) < 1e-6) | (jnp.abs(out_d - ref * scale) < 1e-3)
    assert bool(jnp.all(per_elem_ok)), "dropout output not {0, scaled value} per element"

    print("KERNEL_OK")
</pallas_src>

<mosaic_0001>
module attributes {stable_mosaic.version = 11 : i64} {
  func.func @_pe_dropout_kernel(%arg0: i32, %arg1: i32, %arg2: memref<1xi32, #tpu.memory_space<smem>>, %arg3: memref<2x2x128xf32, #tpu.memory_space<vmem>>, %arg4: memref<2x128xf32, #tpu.memory_space<vmem>>, %arg5: memref<2x2x128xf32, #tpu.memory_space<vmem>>) attributes {dimension_semantics = [#tpu.dimension_semantics<parallel>, #tpu.dimension_semantics<parallel>], iteration_bounds = array<i64: 1, 1>, scalar_prefetch = 1 : i64, scratch_operands = 0 : i64, tpu.core_type = #tpu.core_type<tc>, window_params = [{transform_indices = @transform_0, window_bounds = array<i64: 2, 2, 128>}, {transform_indices = @transform_1, window_bounds = array<i64: 2, 128>}, {transform_indices = @transform_2, window_bounds = array<i64: 2, 2, 128>}]} {
    %c0 = arith.constant 0 : index
    %c0_0 = arith.constant 0 : index
    %c0_1 = arith.constant 0 : index
    %0 = vector.load %arg3[%c0, %c0_0, %c0_1] : memref<2x2x128xf32, #tpu.memory_space<vmem>>, vector<2x2x128xf32>
    %c0_2 = arith.constant 0 : index
    %c0_3 = arith.constant 0 : index
    %1 = vector.load %arg4[%c0_2, %c0_3] : memref<2x128xf32, #tpu.memory_space<vmem>>, vector<2x128xf32>
    %2 = vector.shape_cast %1 : vector<2x128xf32> to vector<1x2x128xf32>
    %3 = vector.broadcast %2 : vector<1x2x128xf32> to vector<2x2x128xf32>
    %4 = arith.addf %0, %3 : vector<2x2x128xf32>
    %c0_4 = arith.constant 0 : index
    %c0_5 = arith.constant 0 : index
    %c0_6 = arith.constant 0 : index
    %5 = vector.load %arg5[%c0_4, %c0_5, %c0_6] : memref<2x2x128xf32, #tpu.memory_space<vmem>>, vector<2x2x128xf32>
    tpu.vector_store %arg5[%c0_4, %c0_5, %c0_6], %4 {strides = array<i32>} : memref<2x2x128xf32, #tpu.memory_space<vmem>>, vector<2x2x128xf32>,
    return
  }
  func.func @transform_0(%arg0: i32, %arg1: i32, %arg2: memref<1xi32, #tpu.memory_space<smem>>) -> (i32, i32, i32) {
    %c0_i32 = arith.constant 0 : i32
    %c0_i32_0 = arith.constant 0 : i32
    return %arg1, %arg0, %c0_i32 : i32, i32, i32
  }
  func.func @transform_1(%arg0: i32, %arg1: i32, %arg2: memref<1xi32, #tpu.memory_space<smem>>) -> (i32, i32) {
    %c0_i32 = arith.constant 0 : i32
    %c0_i32_0 = arith.constant 0 : i32
    return %arg0, %c0_i32 : i32, i32
  }
  func.func @transform_2(%arg0: i32, %arg1: i32, %arg2: memref<1xi32, #tpu.memory_space<smem>>) -> (i32, i32, i32) {
    %c0_i32 = arith.constant 0 : i32
    %c0_i32_0 = arith.constant 0 : i32
    return %arg1, %arg0, %c0_i32 : i32, i32, i32
  }
}

</mosaic_0001>

<llo_original>
// kernel: tpu_custom_call.1
$region0: #{tpu_custom_call.1}
  #allocation0 [shape = 'u32[]', space=smem, size = 0x4, offset = 0x4, fixed_abs, tag = 'smem constant byte address 0x4 - core index']
  #allocation1 [shape = 'u32[144,128]{1,0:T(1,128)}', space=vmem, size = 0x12000, scoped, tag = 'internal scratch']
  #allocation2 [shape = 's32[1]{0}', space=sflag, size = 0x4, scoped, tag = 'scoped memory for tpu_custom_call.1']
  #allocation3 [shape = 's32[1]{0:T(128)S(6)}', space=smem, size = 0x200, scoped, tag = 'prefetched SMEM operand 0']
  %s0 = inlined_call_operand.<no memory space> [shape: s32[1], index: 0, kind: input, shape index: {}]
  %s1 = inlined_call_operand.hbm [shape: f32[2,2,128], index: 1, kind: input, shape index: {}]
  %s2 = inlined_call_operand.vmem [shape: f32[2,128], index: 2, kind: input, shape index: {}]
  %s3 = inlined_call_operand.hbm [shape: f32[2,2,128], index: 3, kind: output, shape index: {}]
  %s4 = sld [smem:[#allocation0]]
  $region22: #{tpu_custom_call.1} parent=0
    _
  %s6 = ssub.s32 1, %s4
  %s7 = scalar_select 0, %s6, %s4
  %8 = sst [smem:[#allocation3]] %s0
  $region1: #{tpu_custom_call.1} parent=0
    #allocation4 [shape = 'u8[2048]{0}', space=vmem, size = 0x800, scoped, tag = 'input window, operand 1, single buffered']
    #allocation5 [shape = 's32[1]{0}', space=sflag, size = 0x4, scoped, tag = 'scoped memory for tpu_custom_call.1']
    #allocation6 [shape = 's32[1]{0}', space=sflag, size = 0x4, scoped, tag = 'scoped memory for tpu_custom_call.1']
    #allocation7 [shape = 'u8[2048]{0}', space=vmem, size = 0x800, scoped, tag = 'output window, operand 0, single buffered']
    %9 = vsyncpa [#allocation5], 0
    %10 = vsyncpa [#allocation6], 0
    // Predicated region
    $region2: #{tpu_custom_call.1} parent=1 // pred_check
      _
    $region3: #{tpu_custom_call.1} parent=1 // pred_check_branch
      %12 = sbr.rel (0) target = $region5
    $region4: #{tpu_custom_call.1} parent=1 // pred_region
      %s14 = ssub.s32 64, 64
      %15 = vsyncadd [#allocation5], %s14
      %s16 = sshll.u32 [#allocation4], 4
      %s17 = int_to_ptr.vmem [resolvable:$true] %s16
      %22 = dma.hbm_to_vmem [thread:$0]  %s1, 64, %s17, [#allocation5], 32, 32, 2
    $region5: #{tpu_custom_call.1} parent=1 // pred_fallthru
      _
    // Predicated region
    $region6: #{tpu_custom_call.1} parent=1 // pred_check
      _
    $region7: #{tpu_custom_call.1} parent=1 // pred_check_branch
      %24 = sbr.rel (0) target = $region9
    $region8: #{tpu_custom_call.1} parent=1 // pred_region
      _
    $region9: #{tpu_custom_call.1} parent=1 // pred_fallthru
      _
    // Predicated region
    $region10: #{tpu_custom_call.1} parent=1 // pred_check
      _
    $region11: #{tpu_custom_call.1} parent=1 // pred_check_branch
      %26 = sbr.rel (0) target = $region13
    $region12: #{tpu_custom_call.1} parent=1 // pred_region
      %27 = dma.done [#allocation5], 64
    $region13: #{tpu_custom_call.1} parent=1 // pred_fallthru
      _
    %v28 = vld [vmem:[#allocation4] sm:$0x3]
    %v29 = vld [vmem:[#allocation4 + $0x2] sm:$0x3]
    %v30 = vld [vmem:[%s2] sm:$0x3]
    %v31 = vadd.f32 %v28, %v30
    %v32 = vadd.f32 %v29, %v30
    %33 = vst [vmem:[#allocation7] sm:$0x3] %v31
    %34 = vst [vmem:[#allocation7 + $0x2] sm:$0x3] %v32
    // Predicated region
    $region14: #{tpu_custom_call.1} parent=1 // pred_check
      _
    $region15: #{tpu_custom_call.1} parent=1 // pred_check_branch
      %36 = sbr.rel (0) target = $region17
    $region16: #{tpu_custom_call.1} parent=1 // pred_region
      %s38 = ssub.s32 64, 64
      %39 = vsyncadd [#allocation6], %s38
      %s40 = sshll.u32 [#allocation7], 4
      %s41 = int_to_ptr.vmem [resolvable:$true] %s40
      %46 = dma.vmem_to_hbm [thread:$0]  %s41, 64, %s3, [#allocation6], 32, 32, 2
    $region17: #{tpu_custom_call.1} parent=1 // pred_fallthru
      _
    // Predicated region
    $region18: #{tpu_custom_call.1} parent=1 // pred_check
      _
    $region19: #{tpu_custom_call.1} parent=1 // pred_check_branch
      %48 = sbr.rel (0) target = $region21
    $region20: #{tpu_custom_call.1} parent=1 // pred_region
      %49 = dma.done [#allocation6], 64
    $region21: #{tpu_custom_call.1} parent=1 // pred_fallthru
      _
    %50 = vsyncpa [#allocation5], 1
    %51 = vsyncpa [#allocation6], 1

</llo_original>
